<compile_context>
chip_gen: v7x
topology: tpu7x:2x2x1
jax: 0.10.0
libtpu: 0.0.40
codegen_flags: <defaults>
</compile_context>

<pallas_src>
from functools import partial

import numpy as np
import jax
import jax.numpy as jnp
from jax.experimental import pallas as pl
from jax.experimental.pallas import tpu as pltpu


def newblock_kernel(x_ref, m_ref, w1_ref, b1_ref, w2_ref, b2_ref, o_ref,
                    *, W, K, P, neg_slope):
    """Fused NewBlock forward, whole batch in one step.

    x_ref  : (Cin, L)          activations, L = N*H*W on the lane axis
    m_ref  : (K*K, L)          per-tap validity masks (1.0 inside image, 0.0 outside)
    w1_ref : (Cred, K*K*Cin)   layer1 im2col weights, BN scale folded, bf16
    b1_ref : (Cred, 1)         layer1 folded BN bias
    w2_ref : (Cin, K*K*Cred)   layer2 im2col weights, BN scale folded, bf16
    b2_ref : (Cin, 1)          layer2 folded BN bias
    o_ref  : (Cin, L)          output (lane-dense)
    """
    xv = x_ref[...]            # (Cin, L) f32 — also the residual
    masks = m_ref[...]         # (K*K, L) f32

    taps = [(ky - P, kx - P) for ky in range(K) for kx in range(K)]

    def build_patches(a):
        # a: (C, L) f32 -> im2col patches (K*K*C, L) bf16
        pieces = []
        for t, (dy, dx) in enumerate(taps):
            if dy == 0 and dx == 0:
                pieces.append(a)                      # center tap: no shift/mask
            else:
                off = dy * W + dx
                # shifted[l] = a[l + off]; wrapped / out-of-image lanes are
                # zeroed by the tap mask (this also prevents cross-batch leaks).
                shifted = jnp.roll(a, -off, axis=1)
                pieces.append(shifted * masks[t:t + 1, :])
        return jnp.concatenate(pieces, axis=0).astype(jnp.bfloat16)

    # ---- layer1: conv(Cin->Cred) + folded BN + LeakyReLU (one MXU matmul) ----
    p1 = build_patches(xv)                                      # (K*K*Cin, L)
    h1 = jnp.dot(w1_ref[...], p1,
                 preferred_element_type=jnp.float32) + b1_ref[...]
    h1 = jnp.where(h1 > 0, h1, neg_slope * h1)                  # (Cred, L)

    # ---- layer2: conv(Cred->Cin) + folded BN + LeakyReLU (one MXU matmul) ----
    p2 = build_patches(h1)                                      # (K*K*Cred, L)
    h2 = jnp.dot(w2_ref[...], p2,
                 preferred_element_type=jnp.float32) + b2_ref[...]
    h2 = jnp.where(h2 > 0, h2, neg_slope * h2)                  # (Cin, L)

    # ---- residual add, lane-dense store ----
    o_ref[...] = h2 + xv


def newblock_forward(x_nchw, params, *, kernel_size=3, padding=1, stride=1,
                     neg_slope=0.01):
    assert stride == 1 and 2 * padding == kernel_size - 1, \
        "residual add requires shape-preserving convs"
    w1, s1, b1, w2, s2, b2 = params          # w*: PyTorch layout (Cout, Cin, K, K)
    N, Cin, H, W = x_nchw.shape
    K, P = kernel_size, padding
    Cred = w1.shape[0]
    L = N * H * W

    # --- weights: (Cout, Cin, K, K) -> (Cout, K*K*Cin), fold BN scale, cast bf16
    w1m = (jnp.transpose(w1, (0, 2, 3, 1)).reshape(Cred, K * K * Cin)
           * s1[:, None]).astype(jnp.bfloat16)
    w2m = (jnp.transpose(w2, (0, 2, 3, 1)).reshape(Cin, K * K * Cred)
           * s2[:, None]).astype(jnp.bfloat16)
    b1c = b1.reshape(Cred, 1).astype(jnp.float32)
    b2c = b2.reshape(Cin, 1).astype(jnp.float32)

    # --- activations: NCHW -> (Cin, N*H*W)  (channels on sublanes, spatial on lanes)
    x2d = jnp.transpose(x_nchw, (1, 0, 2, 3)).reshape(Cin, L).astype(jnp.float32)

    # --- per-tap boundary masks (compile-time constants; replaces jnp.pad of x)
    ys, xs = np.meshgrid(np.arange(H), np.arange(W), indexing="ij")
    ys = np.tile(ys.reshape(-1), N)          # (L,)
    xs = np.tile(xs.reshape(-1), N)
    masks_np = np.zeros((K * K, L), np.float32)
    t = 0
    for ky in range(K):
        for kx in range(K):
            dy, dx = ky - P, kx - P
            valid = ((ys + dy >= 0) & (ys + dy < H) &
                     (xs + dx >= 0) & (xs + dx < W))
            masks_np[t] = valid.astype(np.float32)
            t += 1
    masks = jnp.asarray(masks_np)

    kernel = partial(newblock_kernel, W=W, K=K, P=P, neg_slope=neg_slope)
    out2d = pl.pallas_call(
        kernel,
        out_shape=jax.ShapeDtypeStruct((Cin, L), jnp.float32),
        grid=(1,),                           # whole (tiny) batch in one step
        in_specs=[
            pl.BlockSpec((Cin, L), lambda i: (0, 0)),
            pl.BlockSpec((K * K, L), lambda i: (0, 0)),
            pl.BlockSpec((Cred, K * K * Cin), lambda i: (0, 0)),
            pl.BlockSpec((Cred, 1), lambda i: (0, 0)),
            pl.BlockSpec((Cin, K * K * Cred), lambda i: (0, 0)),
            pl.BlockSpec((Cin, 1), lambda i: (0, 0)),
        ],
        out_specs=pl.BlockSpec((Cin, L), lambda i: (0, 0)),
        compiler_params=pltpu.CompilerParams(
            dimension_semantics=("arbitrary",)),
    )(x2d, masks, w1m, b1c, w2m, b2c)

    # back to NCHW
    return jnp.transpose(out2d.reshape(Cin, N, H, W), (1, 0, 2, 3))


def newblock_reference(x, params, *, padding=1, neg_slope=0.01):
    """Pure-JAX reference (NCHW, matches eval-mode PyTorch NewBlock)."""
    w1, s1, b1, w2, s2, b2 = params
    P = padding

    def conv_bn_lrelu(x, w, s, b):
        y = jax.lax.conv_general_dilated(
            x, w, window_strides=(1, 1), padding=[(P, P), (P, P)],
            dimension_numbers=("NCHW", "OIHW", "NCHW"),
            precision=jax.lax.Precision.HIGHEST)
        y = y * s.reshape(1, -1, 1, 1) + b.reshape(1, -1, 1, 1)
        return jnp.where(y > 0, y, neg_slope * y)

    out = conv_bn_lrelu(x, w1, s1, b1)
    out = conv_bn_lrelu(out, w2, s2, b2)
    return out + x


def make_params(key, in_channels, kernel_size, eps=1e-5):
    """Deterministic synthetic parameters (conv weights + folded eval-mode BN)."""
    Cred = in_channels // 2
    k1, k2, k3, k4 = jax.random.split(key, 4)
    w1 = jax.random.normal(k1, (Cred, in_channels, kernel_size, kernel_size),
                           jnp.float32) * 0.1
    w2 = jax.random.normal(k2, (in_channels, Cred, kernel_size, kernel_size),
                           jnp.float32) * 0.1

    def bn(key, c):
        ka, kb, kc, kd = jax.random.split(key, 4)
        gamma = 1.0 + 0.1 * jax.random.normal(ka, (c,), jnp.float32)
        beta = 0.1 * jax.random.normal(kb, (c,), jnp.float32)
        mean = 0.1 * jax.random.normal(kc, (c,), jnp.float32)
        var = jnp.abs(jax.random.normal(kd, (c,), jnp.float32)) + 0.5
        scale = gamma / jnp.sqrt(var + eps)
        bias = beta - mean * scale
        return scale, bias

    s1, b1 = bn(k3, Cred)
    s2, b2 = bn(k4, in_channels)
    return (w1, s1, b1, w2, s2, b2)


if __name__ == "__main__":
    # NewBlock(in_channels=8, stride=1, kernel_size=3, padding=1) on (2, 8, 16, 16)
    N, Cin, H, W = 2, 8, 16, 16
    K, P, S = 3, 1, 1

    key = jax.random.PRNGKey(0)
    kx, kp = jax.random.split(key)
    x = jax.random.normal(kx, (N, Cin, H, W), jnp.float32)
    params = make_params(kp, Cin, K)

    out = newblock_forward(x, params, kernel_size=K, padding=P, stride=S)
    out = jax.block_until_ready(out)

    ref = jax.block_until_ready(newblock_reference(x, params, padding=P))
    assert out.shape == ref.shape == (N, Cin, H, W)
    # Tolerance accommodates bf16 MXU inputs (f32 accumulation) vs. the f32 reference.
    assert jnp.allclose(out, ref, rtol=2e-2, atol=2e-2), \
        f"max abs err = {jnp.max(jnp.abs(out - ref))}"

    print("KERNEL_OK")
</pallas_src>

<mosaic_0001>
module attributes {stable_mosaic.version = 11 : i64} {
  func.func @newblock_kernel(%arg0: i32, %arg1: memref<8x512xf32, #tpu.memory_space<vmem>>, %arg2: memref<9x512xf32, #tpu.memory_space<vmem>>, %arg3: memref<4x72xbf16, #tpu.memory_space<vmem>>, %arg4: memref<4x1xf32, #tpu.memory_space<vmem>>, %arg5: memref<8x36xbf16, #tpu.memory_space<vmem>>, %arg6: memref<8x1xf32, #tpu.memory_space<vmem>>, %arg7: memref<8x512xf32, #tpu.memory_space<vmem>>) attributes {dimension_semantics = [#tpu.dimension_semantics<arbitrary>], iteration_bounds = array<i64: 1>, scalar_prefetch = 0 : i64, scratch_operands = 0 : i64, tpu.core_type = #tpu.core_type<tc>, window_params = [{pipeline_mode = #tpu.pipeline_mode<synchronous>, transform_indices = @transform_0, window_bounds = array<i64: 8, 512>}, {pipeline_mode = #tpu.pipeline_mode<synchronous>, transform_indices = @transform_1, window_bounds = array<i64: 9, 512>}, {pipeline_mode = #tpu.pipeline_mode<synchronous>, transform_indices = @transform_2, window_bounds = array<i64: 4, 72>}, {pipeline_mode = #tpu.pipeline_mode<synchronous>, transform_indices = @transform_3, window_bounds = array<i64: 4, 1>}, {pipeline_mode = #tpu.pipeline_mode<synchronous>, transform_indices = @transform_4, window_bounds = array<i64: 8, 36>}, {pipeline_mode = #tpu.pipeline_mode<synchronous>, transform_indices = @transform_5, window_bounds = array<i64: 8, 1>}, {pipeline_mode = #tpu.pipeline_mode<synchronous>, transform_indices = @transform_6, window_bounds = array<i64: 8, 512>}]} {
    %c0 = arith.constant 0 : index
    %c0_0 = arith.constant 0 : index
    %0 = vector.load %arg1[%c0, %c0_0] : memref<8x512xf32, #tpu.memory_space<vmem>>, vector<8x512xf32>
    %c0_1 = arith.constant 0 : index
    %c0_2 = arith.constant 0 : index
    %1 = vector.load %arg2[%c0_1, %c0_2] : memref<9x512xf32, #tpu.memory_space<vmem>>, vector<9x512xf32>
    %2 = vector.extract_strided_slice %0 {offsets = [0, 495], sizes = [8, 17], strides = [1, 1]} : vector<8x512xf32> to vector<8x17xf32>
    %3 = vector.extract_strided_slice %0 {offsets = [0, 0], sizes = [8, 495], strides = [1, 1]} : vector<8x512xf32> to vector<8x495xf32>
    %4 = tpu.concatenate %2, %3 in 1 : vector<8x17xf32>, vector<8x495xf32> -> vector<8x512xf32>
    %5 = vector.extract_strided_slice %1 {offsets = [0, 0], sizes = [1, 512], strides = [1, 1]} : vector<9x512xf32> to vector<1x512xf32>
    %6 = vector.broadcast %5 : vector<1x512xf32> to vector<8x512xf32>
    %7 = arith.mulf %4, %6 : vector<8x512xf32>
    %8 = vector.extract_strided_slice %0 {offsets = [0, 496], sizes = [8, 16], strides = [1, 1]} : vector<8x512xf32> to vector<8x16xf32>
    %9 = vector.extract_strided_slice %0 {offsets = [0, 0], sizes = [8, 496], strides = [1, 1]} : vector<8x512xf32> to vector<8x496xf32>
    %10 = tpu.concatenate %8, %9 in 1 : vector<8x16xf32>, vector<8x496xf32> -> vector<8x512xf32>
    %11 = vector.extract_strided_slice %1 {offsets = [1, 0], sizes = [1, 512], strides = [1, 1]} : vector<9x512xf32> to vector<1x512xf32>
    %12 = vector.broadcast %11 : vector<1x512xf32> to vector<8x512xf32>
    %13 = arith.mulf %10, %12 : vector<8x512xf32>
    %14 = vector.extract_strided_slice %0 {offsets = [0, 497], sizes = [8, 15], strides = [1, 1]} : vector<8x512xf32> to vector<8x15xf32>
    %15 = vector.extract_strided_slice %0 {offsets = [0, 0], sizes = [8, 497], strides = [1, 1]} : vector<8x512xf32> to vector<8x497xf32>
    %16 = tpu.concatenate %14, %15 in 1 : vector<8x15xf32>, vector<8x497xf32> -> vector<8x512xf32>
    %17 = vector.extract_strided_slice %1 {offsets = [2, 0], sizes = [1, 512], strides = [1, 1]} : vector<9x512xf32> to vector<1x512xf32>
    %18 = vector.broadcast %17 : vector<1x512xf32> to vector<8x512xf32>
    %19 = arith.mulf %16, %18 : vector<8x512xf32>
    %20 = vector.extract_strided_slice %0 {offsets = [0, 511], sizes = [8, 1], strides = [1, 1]} : vector<8x512xf32> to vector<8x1xf32>
    %21 = vector.extract_strided_slice %0 {offsets = [0, 0], sizes = [8, 511], strides = [1, 1]} : vector<8x512xf32> to vector<8x511xf32>
    %22 = tpu.concatenate %20, %21 in 1 : vector<8x1xf32>, vector<8x511xf32> -> vector<8x512xf32>
    %23 = vector.extract_strided_slice %1 {offsets = [3, 0], sizes = [1, 512], strides = [1, 1]} : vector<9x512xf32> to vector<1x512xf32>
    %24 = vector.broadcast %23 : vector<1x512xf32> to vector<8x512xf32>
    %25 = arith.mulf %22, %24 : vector<8x512xf32>
    %26 = vector.extract_strided_slice %0 {offsets = [0, 1], sizes = [8, 511], strides = [1, 1]} : vector<8x512xf32> to vector<8x511xf32>
    %27 = vector.extract_strided_slice %0 {offsets = [0, 0], sizes = [8, 1], strides = [1, 1]} : vector<8x512xf32> to vector<8x1xf32>
    %28 = tpu.concatenate %26, %27 in 1 : vector<8x511xf32>, vector<8x1xf32> -> vector<8x512xf32>
    %29 = vector.extract_strided_slice %1 {offsets = [5, 0], sizes = [1, 512], strides = [1, 1]} : vector<9x512xf32> to vector<1x512xf32>
    %30 = vector.broadcast %29 : vector<1x512xf32> to vector<8x512xf32>
    %31 = arith.mulf %28, %30 : vector<8x512xf32>
    %32 = vector.extract_strided_slice %0 {offsets = [0, 15], sizes = [8, 497], strides = [1, 1]} : vector<8x512xf32> to vector<8x497xf32>
    %33 = vector.extract_strided_slice %0 {offsets = [0, 0], sizes = [8, 15], strides = [1, 1]} : vector<8x512xf32> to vector<8x15xf32>
    %34 = tpu.concatenate %32, %33 in 1 : vector<8x497xf32>, vector<8x15xf32> -> vector<8x512xf32>
    %35 = vector.extract_strided_slice %1 {offsets = [6, 0], sizes = [1, 512], strides = [1, 1]} : vector<9x512xf32> to vector<1x512xf32>
    %36 = vector.broadcast %35 : vector<1x512xf32> to vector<8x512xf32>
    %37 = arith.mulf %34, %36 : vector<8x512xf32>
    %38 = vector.extract_strided_slice %0 {offsets = [0, 16], sizes = [8, 496], strides = [1, 1]} : vector<8x512xf32> to vector<8x496xf32>
    %39 = vector.extract_strided_slice %0 {offsets = [0, 0], sizes = [8, 16], strides = [1, 1]} : vector<8x512xf32> to vector<8x16xf32>
    %40 = tpu.concatenate %38, %39 in 1 : vector<8x496xf32>, vector<8x16xf32> -> vector<8x512xf32>
    %41 = vector.extract_strided_slice %1 {offsets = [7, 0], sizes = [1, 512], strides = [1, 1]} : vector<9x512xf32> to vector<1x512xf32>
    %42 = vector.broadcast %41 : vector<1x512xf32> to vector<8x512xf32>
    %43 = arith.mulf %40, %42 : vector<8x512xf32>
    %44 = vector.extract_strided_slice %0 {offsets = [0, 17], sizes = [8, 495], strides = [1, 1]} : vector<8x512xf32> to vector<8x495xf32>
    %45 = vector.extract_strided_slice %0 {offsets = [0, 0], sizes = [8, 17], strides = [1, 1]} : vector<8x512xf32> to vector<8x17xf32>
    %46 = tpu.concatenate %44, %45 in 1 : vector<8x495xf32>, vector<8x17xf32> -> vector<8x512xf32>
    %47 = vector.extract_strided_slice %1 {offsets = [8, 0], sizes = [1, 512], strides = [1, 1]} : vector<9x512xf32> to vector<1x512xf32>
    %48 = vector.broadcast %47 : vector<1x512xf32> to vector<8x512xf32>
    %49 = arith.mulf %46, %48 : vector<8x512xf32>
    %50 = tpu.concatenate %7, %13, %19, %25, %0, %31, %37, %43, %49 in 0 : vector<8x512xf32>, vector<8x512xf32>, vector<8x512xf32>, vector<8x512xf32>, vector<8x512xf32>, vector<8x512xf32>, vector<8x512xf32>, vector<8x512xf32>, vector<8x512xf32> -> vector<72x512xf32>
    %51 = arith.truncf %50 : vector<72x512xf32> to vector<72x512xbf16>
    %c0_3 = arith.constant 0 : index
    %c0_4 = arith.constant 0 : index
    %52 = vector.load %arg3[%c0_3, %c0_4] : memref<4x72xbf16, #tpu.memory_space<vmem>>, vector<4x72xbf16>
    %cst = arith.constant dense<0.000000e+00> : vector<4x512xf32>
    %53 = tpu.matmul %52, %51, %cst {dimension_numbers = #tpu.dot_dimension_numbers<[1], [0], [0], [1], [0, 0, 1, 1], [], []>} : vector<4x72xbf16>, vector<72x512xbf16>, vector<4x512xf32> -> vector<4x512xf32>
    %c0_5 = arith.constant 0 : index
    %c0_6 = arith.constant 0 : index
    %54 = vector.load %arg4[%c0_5, %c0_6] : memref<4x1xf32, #tpu.memory_space<vmem>>, vector<4x1xf32>
    %55 = vector.broadcast %54 : vector<4x1xf32> to vector<4x512xf32>
    %56 = arith.addf %53, %55 : vector<4x512xf32>
    %cst_7 = arith.constant 0.000000e+00 : f32
    %57 = vector.broadcast %cst_7 : f32 to vector<4x512xf32>
    %58 = arith.cmpf ogt, %56, %57 : vector<4x512xf32>
    %cst_8 = arith.constant 0.00999999977 : f32
    %59 = vector.broadcast %cst_8 : f32 to vector<4x512xf32>
    %60 = arith.mulf %59, %56 : vector<4x512xf32>
    %61 = arith.select %58, %56, %60 : vector<4x512xi1>, vector<4x512xf32>
    %62 = vector.extract_strided_slice %61 {offsets = [0, 495], sizes = [4, 17], strides = [1, 1]} : vector<4x512xf32> to vector<4x17xf32>
    %63 = vector.extract_strided_slice %61 {offsets = [0, 0], sizes = [4, 495], strides = [1, 1]} : vector<4x512xf32> to vector<4x495xf32>
    %64 = tpu.concatenate %62, %63 in 1 : vector<4x17xf32>, vector<4x495xf32> -> vector<4x512xf32>
    %65 = vector.extract_strided_slice %1 {offsets = [0, 0], sizes = [1, 512], strides = [1, 1]} : vector<9x512xf32> to vector<1x512xf32>
    %66 = vector.broadcast %65 : vector<1x512xf32> to vector<4x512xf32>
    %67 = arith.mulf %64, %66 : vector<4x512xf32>
    %68 = vector.extract_strided_slice %61 {offsets = [0, 496], sizes = [4, 16], strides = [1, 1]} : vector<4x512xf32> to vector<4x16xf32>
    %69 = vector.extract_strided_slice %61 {offsets = [0, 0], sizes = [4, 496], strides = [1, 1]} : vector<4x512xf32> to vector<4x496xf32>
    %70 = tpu.concatenate %68, %69 in 1 : vector<4x16xf32>, vector<4x496xf32> -> vector<4x512xf32>
    %71 = vector.extract_strided_slice %1 {offsets = [1, 0], sizes = [1, 512], strides = [1, 1]} : vector<9x512xf32> to vector<1x512xf32>
    %72 = vector.broadcast %71 : vector<1x512xf32> to vector<4x512xf32>
    %73 = arith.mulf %70, %72 : vector<4x512xf32>
    %74 = vector.extract_strided_slice %61 {offsets = [0, 497], sizes = [4, 15], strides = [1, 1]} : vector<4x512xf32> to vector<4x15xf32>
    %75 = vector.extract_strided_slice %61 {offsets = [0, 0], sizes = [4, 497], strides = [1, 1]} : vector<4x512xf32> to vector<4x497xf32>
    %76 = tpu.concatenate %74, %75 in 1 : vector<4x15xf32>, vector<4x497xf32> -> vector<4x512xf32>
    %77 = vector.extract_strided_slice %1 {offsets = [2, 0], sizes = [1, 512], strides = [1, 1]} : vector<9x512xf32> to vector<1x512xf32>
    %78 = vector.broadcast %77 : vector<1x512xf32> to vector<4x512xf32>
    %79 = arith.mulf %76, %78 : vector<4x512xf32>
    %80 = vector.extract_strided_slice %61 {offsets = [0, 511], sizes = [4, 1], strides = [1, 1]} : vector<4x512xf32> to vector<4x1xf32>
    %81 = vector.extract_strided_slice %61 {offsets = [0, 0], sizes = [4, 511], strides = [1, 1]} : vector<4x512xf32> to vector<4x511xf32>
    %82 = tpu.concatenate %80, %81 in 1 : vector<4x1xf32>, vector<4x511xf32> -> vector<4x512xf32>
    %83 = vector.extract_strided_slice %1 {offsets = [3, 0], sizes = [1, 512], strides = [1, 1]} : vector<9x512xf32> to vector<1x512xf32>
    %84 = vector.broadcast %83 : vector<1x512xf32> to vector<4x512xf32>
    %85 = arith.mulf %82, %84 : vector<4x512xf32>
    %86 = vector.extract_strided_slice %61 {offsets = [0, 1], sizes = [4, 511], strides = [1, 1]} : vector<4x512xf32> to vector<4x511xf32>
    %87 = vector.extract_strided_slice %61 {offsets = [0, 0], sizes = [4, 1], strides = [1, 1]} : vector<4x512xf32> to vector<4x1xf32>
    %88 = tpu.concatenate %86, %87 in 1 : vector<4x511xf32>, vector<4x1xf32> -> vector<4x512xf32>
    %89 = vector.extract_strided_slice %1 {offsets = [5, 0], sizes = [1, 512], strides = [1, 1]} : vector<9x512xf32> to vector<1x512xf32>
    %90 = vector.broadcast %89 : vector<1x512xf32> to vector<4x512xf32>
    %91 = arith.mulf %88, %90 : vector<4x512xf32>
    %92 = vector.extract_strided_slice %61 {offsets = [0, 15], sizes = [4, 497], strides = [1, 1]} : vector<4x512xf32> to vector<4x497xf32>
    %93 = vector.extract_strided_slice %61 {offsets = [0, 0], sizes = [4, 15], strides = [1, 1]} : vector<4x512xf32> to vector<4x15xf32>
    %94 = tpu.concatenate %92, %93 in 1 : vector<4x497xf32>, vector<4x15xf32> -> vector<4x512xf32>
    %95 = vector.extract_strided_slice %1 {offsets = [6, 0], sizes = [1, 512], strides = [1, 1]} : vector<9x512xf32> to vector<1x512xf32>
    %96 = vector.broadcast %95 : vector<1x512xf32> to vector<4x512xf32>
    %97 = arith.mulf %94, %96 : vector<4x512xf32>
    %98 = vector.extract_strided_slice %61 {offsets = [0, 16], sizes = [4, 496], strides = [1, 1]} : vector<4x512xf32> to vector<4x496xf32>
    %99 = vector.extract_strided_slice %61 {offsets = [0, 0], sizes = [4, 16], strides = [1, 1]} : vector<4x512xf32> to vector<4x16xf32>
    %100 = tpu.concatenate %98, %99 in 1 : vector<4x496xf32>, vector<4x16xf32> -> vector<4x512xf32>
    %101 = vector.extract_strided_slice %1 {offsets = [7, 0], sizes = [1, 512], strides = [1, 1]} : vector<9x512xf32> to vector<1x512xf32>
    %102 = vector.broadcast %101 : vector<1x512xf32> to vector<4x512xf32>
    %103 = arith.mulf %100, %102 : vector<4x512xf32>
    %104 = vector.extract_strided_slice %61 {offsets = [0, 17], sizes = [4, 495], strides = [1, 1]} : vector<4x512xf32> to vector<4x495xf32>
    %105 = vector.extract_strided_slice %61 {offsets = [0, 0], sizes = [4, 17], strides = [1, 1]} : vector<4x512xf32> to vector<4x17xf32>
    %106 = tpu.concatenate %104, %105 in 1 : vector<4x495xf32>, vector<4x17xf32> -> vector<4x512xf32>
    %107 = vector.extract_strided_slice %1 {offsets = [8, 0], sizes = [1, 512], strides = [1, 1]} : vector<9x512xf32> to vector<1x512xf32>
    %108 = vector.broadcast %107 : vector<1x512xf32> to vector<4x512xf32>
    %109 = arith.mulf %106, %108 : vector<4x512xf32>
    %110 = tpu.concatenate %67, %73, %79, %85, %61, %91, %97, %103, %109 in 0 : vector<4x512xf32>, vector<4x512xf32>, vector<4x512xf32>, vector<4x512xf32>, vector<4x512xf32>, vector<4x512xf32>, vector<4x512xf32>, vector<4x512xf32>, vector<4x512xf32> -> vector<36x512xf32>
    %111 = arith.truncf %110 : vector<36x512xf32> to vector<36x512xbf16>
    %c0_9 = arith.constant 0 : index
    %c0_10 = arith.constant 0 : index
    %112 = vector.load %arg5[%c0_9, %c0_10] : memref<8x36xbf16, #tpu.memory_space<vmem>>, vector<8x36xbf16>
    %cst_11 = arith.constant dense<0.000000e+00> : vector<8x512xf32>
    %113 = tpu.matmul %112, %111, %cst_11 {dimension_numbers = #tpu.dot_dimension_numbers<[1], [0], [0], [1], [0, 0, 1, 1], [], []>} : vector<8x36xbf16>, vector<36x512xbf16>, vector<8x512xf32> -> vector<8x512xf32>
    %c0_12 = arith.constant 0 : index
    %c0_13 = arith.constant 0 : index
    %114 = vector.load %arg6[%c0_12, %c0_13] : memref<8x1xf32, #tpu.memory_space<vmem>>, vector<8x1xf32>
    %115 = vector.broadcast %114 : vector<8x1xf32> to vector<8x512xf32>
    %116 = arith.addf %113, %115 : vector<8x512xf32>
    %cst_14 = arith.constant 0.000000e+00 : f32
    %117 = vector.broadcast %cst_14 : f32 to vector<8x512xf32>
    %118 = arith.cmpf ogt, %116, %117 : vector<8x512xf32>
    %cst_15 = arith.constant 0.00999999977 : f32
    %119 = vector.broadcast %cst_15 : f32 to vector<8x512xf32>
    %120 = arith.mulf %119, %116 : vector<8x512xf32>
    %121 = arith.select %118, %116, %120 : vector<8x512xi1>, vector<8x512xf32>
    %122 = arith.addf %121, %0 : vector<8x512xf32>
    %c0_16 = arith.constant 0 : index
    %c0_17 = arith.constant 0 : index
    %123 = vector.load %arg7[%c0_16, %c0_17] : memref<8x512xf32, #tpu.memory_space<vmem>>, vector<8x512xf32>
    tpu.vector_store %arg7[%c0_16, %c0_17], %122 {strides = array<i32>} : memref<8x512xf32, #tpu.memory_space<vmem>>, vector<8x512xf32>,
    return
  }
  func.func @transform_0(%arg0: i32) -> (i32, i32) {
    %c0_i32 = arith.constant 0 : i32
    %c0_i32_0 = arith.constant 0 : i32
    %c0_i32_1 = arith.constant 0 : i32
    return %c0_i32, %c0_i32_0 : i32, i32
  }
  func.func @transform_1(%arg0: i32) -> (i32, i32) {
    %c0_i32 = arith.constant 0 : i32
    %c0_i32_0 = arith.constant 0 : i32
    %c0_i32_1 = arith.constant 0 : i32
    return %c0_i32, %c0_i32_0 : i32, i32
  }
  func.func @transform_2(%arg0: i32) -> (i32, i32) {
    %c0_i32 = arith.constant 0 : i32
    %c0_i32_0 = arith.constant 0 : i32
    %c0_i32_1 = arith.constant 0 : i32
    return %c0_i32, %c0_i32_0 : i32, i32
  }
  func.func @transform_3(%arg0: i32) -> (i32, i32) {
    %c0_i32 = arith.constant 0 : i32
    %c0_i32_0 = arith.constant 0 : i32
    %c0_i32_1 = arith.constant 0 : i32
    return %c0_i32, %c0_i32_0 : i32, i32
  }
  func.func @transform_4(%arg0: i32) -> (i32, i32) {
    %c0_i32 = arith.constant 0 : i32
    %c0_i32_0 = arith.constant 0 : i32
    %c0_i32_1 = arith.constant 0 : i32
    return %c0_i32, %c0_i32_0 : i32, i32
  }
  func.func @transform_5(%arg0: i32) -> (i32, i32) {
    %c0_i32 = arith.constant 0 : i32
    %c0_i32_0 = arith.constant 0 : i32
    %c0_i32_1 = arith.constant 0 : i32
    return %c0_i32, %c0_i32_0 : i32, i32
  }
  func.func @transform_6(%arg0: i32) -> (i32, i32) {
    %c0_i32 = arith.constant 0 : i32
    %c0_i32_0 = arith.constant 0 : i32
    %c0_i32_1 = arith.constant 0 : i32
    return %c0_i32, %c0_i32_0 : i32, i32
  }
}

</mosaic_0001>

<llo_original>
// kernel: tpu_custom_call.1
$region0: #{tpu_custom_call.1}
  #allocation0 [shape = 'u32[]', space=smem, size = 0x4, offset = 0x4, fixed_abs, tag = 'smem constant byte address 0x4 - core index']
  #allocation1 [shape = 'u32[144,128]{1,0:T(1,128)}', space=vmem, size = 0x12000, scoped, tag = 'internal scratch']
  %s0 = inlined_call_operand.hbm [shape: f32[8,512], index: 0, kind: input, shape index: {}]
  %s1 = inlined_call_operand.hbm [shape: f32[9,512], index: 1, kind: input, shape index: {}]
  %s2 = inlined_call_operand.vmem [shape: bf16[4,72], index: 2, kind: input, shape index: {}]
  %s3 = inlined_call_operand.vmem [shape: f32[4,1], index: 3, kind: input, shape index: {}]
  %s4 = inlined_call_operand.vmem [shape: bf16[8,36], index: 4, kind: input, shape index: {}]
  %s5 = inlined_call_operand.vmem [shape: f32[8,1], index: 5, kind: input, shape index: {}]
  %s6 = inlined_call_operand.hbm [shape: f32[8,512], index: 6, kind: output, shape index: {}]
  %s7 = sld [smem:[#allocation0]]
  $region42: #{tpu_custom_call.1} parent=0
    _
  %s9 = ssub.s32 1, %s7
  %s10 = scalar_select 0, %s9, %s7
  $region1: #{tpu_custom_call.1} parent=0
    #allocation2 [shape = 'u8[16384]{0}', space=vmem, size = 0x4000, scoped, tag = 'input window, operand 0, single buffered']
    #allocation3 [shape = 's32[1]{0}', space=sflag, size = 0x4, scoped, tag = 'scoped memory for tpu_custom_call.1']
    #allocation4 [shape = 's32[1]{0}', space=sflag, size = 0x4, scoped, tag = 'scoped memory for tpu_custom_call.1']
    #allocation5 [shape = 'u8[32768]{0}', space=vmem, size = 0x8000, scoped, tag = 'input window, operand 1, single buffered']
    #allocation6 [shape = 's32[1]{0}', space=sflag, size = 0x4, scoped, tag = 'scoped memory for tpu_custom_call.1']
    #allocation7 [shape = 'u8[16384]{0}', space=vmem, size = 0x4000, scoped, tag = 'output window, operand 0, single buffered']
    %11 = vsyncpa [#allocation3], 0
    %12 = vsyncpa [#allocation6], 0
    %13 = vsyncpa [#allocation4], 0
    // Predicated region
    $region2: #{tpu_custom_call.1} parent=1 // pred_check
      _
    $region3: #{tpu_custom_call.1} parent=1 // pred_check_branch
      %15 = sbr.rel (0) target = $region5
    $region4: #{tpu_custom_call.1} parent=1 // pred_region
      %s17 = ssub.s32 512, 512
      %18 = vsyncadd [#allocation3], %s17
      %s20 = sshll.u32 [#allocation2], 4
      %s21 = int_to_ptr.vmem [resolvable:$true] %s20
      %23 = dma.hbm_to_vmem [thread:$0]  %s0, 512, %s21, [#allocation3]
    $region5: #{tpu_custom_call.1} parent=1 // pred_fallthru
      _
    // Predicated region
    $region6: #{tpu_custom_call.1} parent=1 // pred_check
      _
    $region7: #{tpu_custom_call.1} parent=1 // pred_check_branch
      %25 = sbr.rel (0) target = $region9
    $region8: #{tpu_custom_call.1} parent=1 // pred_region
      %s27 = ssub.s32 1024, 1024
      %28 = vsyncadd [#allocation6], %s27
      %s29 = sshll.u32 [#allocation5], 4
      %s30 = int_to_ptr.vmem [resolvable:$true] %s29
      %35 = dma.hbm_to_vmem [thread:$0]  %s1, 1024, %s30, [#allocation6], 512, 512, 32
    $region9: #{tpu_custom_call.1} parent=1 // pred_fallthru
      _
    // Predicated region
    $region10: #{tpu_custom_call.1} parent=1 // pred_check
      _
    $region11: #{tpu_custom_call.1} parent=1 // pred_check_branch
      %37 = sbr.rel (0) target = $region13
    $region12: #{tpu_custom_call.1} parent=1 // pred_region
      _
    $region13: #{tpu_custom_call.1} parent=1 // pred_fallthru
      _
    // Predicated region
    $region14: #{tpu_custom_call.1} parent=1 // pred_check
      _
    $region15: #{tpu_custom_call.1} parent=1 // pred_check_branch
      %39 = sbr.rel (0) target = $region17
    $region16: #{tpu_custom_call.1} parent=1 // pred_region
      _
    $region17: #{tpu_custom_call.1} parent=1 // pred_fallthru
      _
    // Predicated region
    $region18: #{tpu_custom_call.1} parent=1 // pred_check
      _
    $region19: #{tpu_custom_call.1} parent=1 // pred_check_branch
      %41 = sbr.rel (0) target = $region21
    $region20: #{tpu_custom_call.1} parent=1 // pred_region
      _
    $region21: #{tpu_custom_call.1} parent=1 // pred_fallthru
      _
    // Predicated region
    $region22: #{tpu_custom_call.1} parent=1 // pred_check
      _
    $region23: #{tpu_custom_call.1} parent=1 // pred_check_branch
      %43 = sbr.rel (0) target = $region25
    $region24: #{tpu_custom_call.1} parent=1 // pred_region
      _
    $region25: #{tpu_custom_call.1} parent=1 // pred_fallthru
      _
    // Predicated region
    $region26: #{tpu_custom_call.1} parent=1 // pred_check
      _
    $region27: #{tpu_custom_call.1} parent=1 // pred_check_branch
      %45 = sbr.rel (0) target = $region29
    $region28: #{tpu_custom_call.1} parent=1 // pred_region
      %46 = dma.done [#allocation3], 512
    $region29: #{tpu_custom_call.1} parent=1 // pred_fallthru
      _
    // Predicated region
    $region30: #{tpu_custom_call.1} parent=1 // pred_check
      _
    $region31: #{tpu_custom_call.1} parent=1 // pred_check_branch
      %48 = sbr.rel (0) target = $region33
    $region32: #{tpu_custom_call.1} parent=1 // pred_region
      %49 = dma.done [#allocation6], 1024
    $region33: #{tpu_custom_call.1} parent=1 // pred_fallthru
      _
    %v51 = vld [vmem:[#allocation2] sm:$0xff]
    %v52 = vld [vmem:[#allocation2 + $0x8] sm:$0xff]
    %v53 = vld [vmem:[#allocation2 + $0x10] sm:$0xff]
    %v54 = vld [vmem:[#allocation2 + $0x18] sm:$0xff]
    %v55 = vld [vmem:[#allocation5] sm:$0xff]
    %v56 = vld [vmem:[#allocation5 + $0x8] sm:$0xff]
    %v57 = vld [vmem:[#allocation5 + $0x10] sm:$0xff]
    %v58 = vld [vmem:[#allocation5 + $0x18] sm:$0xff]
    %v59 = vld [vmem:[#allocation5 + $0x20] sm:$0x1]
    %v60 = vld [vmem:[#allocation5 + $0x28] sm:$0x1]
    %v61 = vld [vmem:[#allocation5 + $0x30] sm:$0x1]
    %v62 = vld [vmem:[#allocation5 + $0x38] sm:$0x1]
    %64 = vrot.lane.b32.xlu0 %v54, 17
    %v65 = vpop.permute.xlu0 %64
    %70 = vrot.lane.b32.xlu0 %v51, 17
    %v71 = vpop.permute.xlu0 %70
    %72 = vrot.lane.b32.xlu0 %v52, 17
    %v73 = vpop.permute.xlu0 %72
    %74 = vrot.lane.b32.xlu0 %v53, 17
    %v75 = vpop.permute.xlu0 %74
    %vm76 = vcmask 138240
    %v77 = vsel %vm76, %v71, %v73
    %v78 = vsel %vm76, %v73, %v75
    %v79 = vsel %vm76, %v75, %v65
    %v84 = vsel %vm76, %v65, %v71
    %v85 = vlaneseq
    %v86 = vshrl.u32 %v85, 7
    %v87 = vsub.s32 0, %v86
    %v88 = vrot.slane %v55, %v87
    %v89 = vlaneseq
    %v90 = vshrl.u32 %v89, 7
    %v91 = vsub.s32 0, %v90
    %v92 = vrot.slane %v56, %v91
    %v93 = vlaneseq
    %v94 = vshrl.u32 %v93, 7
    %v95 = vsub.s32 0, %v94
    %v96 = vrot.slane %v57, %v95
    %v97 = vlaneseq
    %v98 = vshrl.u32 %v97, 7
    %v99 = vsub.s32 0, %v98
    %v100 = vrot.slane %v58, %v99
    %v101 = vmul.f32 %v84, %v88
    %v102 = vmul.f32 %v77, %v92
    %v103 = vmul.f32 %v78, %v96
    %v104 = vmul.f32 %v79, %v100
    %105 = vrot.lane.b32.xlu0 %v54, 16
    %v106 = vpop.permute.xlu0 %105
    %108 = vrot.lane.b32.xlu0 %v51, 16
    %v109 = vpop.permute.xlu0 %108
    %110 = vrot.lane.b32.xlu0 %v52, 16
    %v111 = vpop.permute.xlu0 %110
    %112 = vrot.lane.b32.xlu0 %v53, 16
    %v113 = vpop.permute.xlu0 %112
    %vm114 = vcmask 130048
    %v115 = vsel %vm114, %v109, %v111
    %v116 = vsel %vm114, %v111, %v113
    %v117 = vsel %vm114, %v113, %v106
    %v122 = vsel %vm114, %v106, %v109
    %v123 = vlaneseq
    %v124 = vshrl.u32 %v123, 7
    %v125 = vsub.s32 1, %v124
    %v126 = vrot.slane %v55, %v125
    %v127 = vlaneseq
    %v128 = vshrl.u32 %v127, 7
    %v129 = vsub.s32 1, %v128
    %v130 = vrot.slane %v56, %v129
    %v131 = vlaneseq
    %v132 = vshrl.u32 %v131, 7
    %v133 = vsub.s32 1, %v132
    %v134 = vrot.slane %v57, %v133
    %v135 = vlaneseq
    %v136 = vshrl.u32 %v135, 7
    %v137 = vsub.s32 1, %v136
    %v138 = vrot.slane %v58, %v137
    %v139 = vmul.f32 %v122, %v126
    %v140 = vmul.f32 %v115, %v130
    %v141 = vmul.f32 %v116, %v134
    %v142 = vmul.f32 %v117, %v138
    %143 = vrot.lane.b32.xlu0 %v54, 15
    %v144 = vpop.permute.xlu0 %143
    %146 = vrot.lane.b32.xlu0 %v51, 15
    %v147 = vpop.permute.xlu0 %146
    %148 = vrot.lane.b32.xlu0 %v52, 15
    %v149 = vpop.permute.xlu0 %148
    %150 = vrot.lane.b32.xlu0 %v53, 15
    %v151 = vpop.permute.xlu0 %150
    %vm152 = vcmask 121856
    %v153 = vsel %vm152, %v147, %v149
    %v154 = vsel %vm152, %v149, %v151
    %v155 = vsel %vm152, %v151, %v144
    %v160 = vsel %vm152, %v144, %v147
    %v161 = vlaneseq
    %v162 = vshrl.u32 %v161, 7
    %v163 = vsub.s32 2, %v162
    %v164 = vrot.slane %v55, %v163
    %v165 = vlaneseq
    %v166 = vshrl.u32 %v165, 7
    %v167 = vsub.s32 2, %v166
    %v168 = vrot.slane %v56, %v167
    %v169 = vlaneseq
    %v170 = vshrl.u32 %v169, 7
    %v171 = vsub.s32 2, %v170
    %v172 = vrot.slane %v57, %v171
    %v173 = vlaneseq
    %v174 = vshrl.u32 %v173, 7
    %v175 = vsub.s32 2, %v174
    %v176 = vrot.slane %v58, %v175
    %v177 = vmul.f32 %v160, %v164
    %v178 = vmul.f32 %v153, %v168
    %v179 = vmul.f32 %v154, %v172
    %v180 = vmul.f32 %v155, %v176
    %181 = vrot.lane.b32.xlu0 %v54, 1
    %v182 = vpop.permute.xlu0 %181
    %184 = vrot.lane.b32.xlu0 %v51, 1
    %v185 = vpop.permute.xlu0 %184
    %186 = vrot.lane.b32.xlu0 %v52, 1
    %v187 = vpop.permute.xlu0 %186
    %188 = vrot.lane.b32.xlu0 %v53, 1
    %v189 = vpop.permute.xlu0 %188
    %vm190 = vcmask 7168
    %v191 = vsel %vm190, %v185, %v187
    %v192 = vsel %vm190, %v187, %v189
    %v193 = vsel %vm190, %v189, %v182
    %v198 = vsel %vm190, %v182, %v185
    %v199 = vlaneseq
    %v200 = vshrl.u32 %v199, 7
    %v201 = vsub.s32 3, %v200
    %v202 = vrot.slane %v55, %v201
    %v203 = vlaneseq
    %v204 = vshrl.u32 %v203, 7
    %v205 = vsub.s32 3, %v204
    %v206 = vrot.slane %v56, %v205
    %v207 = vlaneseq
    %v208 = vshrl.u32 %v207, 7
    %v209 = vsub.s32 3, %v208
    %v210 = vrot.slane %v57, %v209
    %v211 = vlaneseq
    %v212 = vshrl.u32 %v211, 7
    %v213 = vsub.s32 3, %v212
    %v214 = vrot.slane %v58, %v213
    %v215 = vmul.f32 %v198, %v202
    %v216 = vmul.f32 %v191, %v206
    %v217 = vmul.f32 %v192, %v210
    %v218 = vmul.f32 %v193, %v214
    %219 = vrot.lane.b32.xlu0 %v51, 127
    %v220 = vpop.permute.xlu0 %219
    %221 = vrot.lane.b32.xlu0 %v52, 127
    %v222 = vpop.permute.xlu0 %221
    %223 = vrot.lane.b32.xlu0 %v53, 127
    %v224 = vpop.permute.xlu0 %223
    %225 = vrot.lane.b32.xlu0 %v54, 127
    %v226 = vpop.permute.xlu0 %225
    %vm227 = vcmask 1039360
    %v228 = vsel %vm227, %v220, %v222
    %v229 = vsel %vm227, %v222, %v224
    %v230 = vsel %vm227, %v224, %v226
    %v236 = vsel %vm227, %v226, %v220
    %v237 = vlaneseq
    %v238 = vshrl.u32 %v237, 7
    %v239 = vsub.s32 5, %v238
    %v240 = vrot.slane %v55, %v239
    %v241 = vlaneseq
    %v242 = vshrl.u32 %v241, 7
    %v243 = vsub.s32 5, %v242
    %v244 = vrot.slane %v56, %v243
    %v245 = vlaneseq
    %v246 = vshrl.u32 %v245, 7
    %v247 = vsub.s32 5, %v246
    %v248 = vrot.slane %v57, %v247
    %v249 = vlaneseq
    %v250 = vshrl.u32 %v249, 7
    %v251 = vsub.s32 5, %v250
    %v252 = vrot.slane %v58, %v251
    %v253 = vmul.f32 %v228, %v240
    %v254 = vmul.f32 %v229, %v244
    %v255 = vmul.f32 %v230, %v248
    %v256 = vmul.f32 %v236, %v252
    %257 = vrot.lane.b32.xlu0 %v51, 113
    %v258 = vpop.permute.xlu0 %257
    %259 = vrot.lane.b32.xlu0 %v52, 113
    %v260 = vpop.permute.xlu0 %259
    %261 = vrot.lane.b32.xlu0 %v53, 113
    %v262 = vpop.permute.xlu0 %261
    %263 = vrot.lane.b32.xlu0 %v54, 113
    %v264 = vpop.permute.xlu0 %263
    %vm265 = vcmask 924672
    %v266 = vsel %vm265, %v258, %v260
    %v267 = vsel %vm265, %v260, %v262
    %v268 = vsel %vm265, %v262, %v264
    %v274 = vsel %vm265, %v264, %v258
    %v275 = vlaneseq
    %v276 = vshrl.u32 %v275, 7
    %v277 = vsub.s32 6, %v276
    %v278 = vrot.slane %v55, %v277
    %v279 = vlaneseq
    %v280 = vshrl.u32 %v279, 7
    %v281 = vsub.s32 6, %v280
    %v282 = vrot.slane %v56, %v281
    %v283 = vlaneseq
    %v284 = vshrl.u32 %v283, 7
    %v285 = vsub.s32 6, %v284
    %v286 = vrot.slane %v57, %v285
    %v287 = vlaneseq
    %v288 = vshrl.u32 %v287, 7
    %v289 = vsub.s32 6, %v288
    %v290 = vrot.slane %v58, %v289
    %v291 = vmul.f32 %v266, %v278
    %v292 = vmul.f32 %v267, %v282
    %v293 = vmul.f32 %v268, %v286
    %v294 = vmul.f32 %v274, %v290
    %295 = vrot.lane.b32.xlu0 %v51, 112
    %v296 = vpop.permute.xlu0 %295
    %297 = vrot.lane.b32.xlu0 %v52, 112
    %v298 = vpop.permute.xlu0 %297
    %299 = vrot.lane.b32.xlu0 %v53, 112
    %v300 = vpop.permute.xlu0 %299
    %301 = vrot.lane.b32.xlu0 %v54, 112
    %v302 = vpop.permute.xlu0 %301
    %vm303 = vcmask 916480
    %v304 = vsel %vm303, %v296, %v298
    %v305 = vsel %vm303, %v298, %v300
    %v306 = vsel %vm303, %v300, %v302
    %v312 = vsel %vm303, %v302, %v296
    %v313 = vlaneseq
    %v314 = vshrl.u32 %v313, 7
    %v315 = vsub.s32 7, %v314
    %v316 = vrot.slane %v55, %v315
    %v317 = vlaneseq
    %v318 = vshrl.u32 %v317, 7
    %v319 = vsub.s32 7, %v318
    %v320 = vrot.slane %v56, %v319
    %v321 = vlaneseq
    %v322 = vshrl.u32 %v321, 7
    %v323 = vsub.s32 7, %v322
    %v324 = vrot.slane %v57, %v323
    %v325 = vlaneseq
    %v326 = vshrl.u32 %v325, 7
    %v327 = vsub.s32 7, %v326
    %v328 = vrot.slane %v58, %v327
    %v329 = vmul.f32 %v304, %v316
    %v330 = vmul.f32 %v305, %v320
    %v331 = vmul.f32 %v306, %v324
    %v332 = vmul.f32 %v312, %v328
    %333 = vrot.lane.b32.xlu0 %v51, 111
    %v334 = vpop.permute.xlu0 %333
    %335 = vrot.lane.b32.xlu0 %v52, 111
    %v336 = vpop.permute.xlu0 %335
    %337 = vrot.lane.b32.xlu0 %v53, 111
    %v338 = vpop.permute.xlu0 %337
    %339 = vrot.lane.b32.xlu0 %v54, 111
    %v340 = vpop.permute.xlu0 %339
    %vm341 = vcmask 908288
    %v342 = vsel %vm341, %v334, %v336
    %v343 = vsel %vm341, %v336, %v338
    %v344 = vsel %vm341, %v338, %v340
    %v350 = vsel %vm341, %v340, %v334
    %v351 = vlaneseq
    %v352 = vshrl.u32 %v351, 7
    %v353 = vsub.s32 0, %v352
    %v354 = vrot.slane %v59, %v353
    %v355 = vlaneseq
    %v356 = vshrl.u32 %v355, 7
    %v357 = vsub.s32 0, %v356
    %v358 = vrot.slane %v60, %v357
    %v359 = vlaneseq
    %v360 = vshrl.u32 %v359, 7
    %v361 = vsub.s32 0, %v360
    %v362 = vrot.slane %v61, %v361
    %v363 = vlaneseq
    %v364 = vshrl.u32 %v363, 7
    %v365 = vsub.s32 0, %v364
    %v366 = vrot.slane %v62, %v365
    %v367 = vmul.f32 %v342, %v354
    %v368 = vmul.f32 %v343, %v358
    %v369 = vmul.f32 %v344, %v362
    %v370 = vmul.f32 %v350, %v366
    %v371 = vpack.c.bf16 %v139, %v101
    %v372 = vpack.c.bf16 %v140, %v102
    %v373 = vpack.c.bf16 %v141, %v103
    %v374 = vpack.c.bf16 %v142, %v104
    %v375 = vpack.c.bf16 %v215, %v177
    %v376 = vpack.c.bf16 %v216, %v178
    %v377 = vpack.c.bf16 %v217, %v179
    %v378 = vpack.c.bf16 %v218, %v180
    %v379 = vpack.c.bf16 %v253, %v51
    %v380 = vpack.c.bf16 %v254, %v52
    %v381 = vpack.c.bf16 %v255, %v53
    %v382 = vpack.c.bf16 %v256, %v54
    %v383 = vpack.c.bf16 %v329, %v291
    %v384 = vpack.c.bf16 %v330, %v292
    %v385 = vpack.c.bf16 %v331, %v293
    %v386 = vpack.c.bf16 %v332, %v294
    %v387 = vpack.c.bf16 %v367, %v367
    %v388 = vpack.c.bf16 %v368, %v368
    %v389 = vpack.c.bf16 %v369, %v369
    %v390 = vpack.c.bf16 %v370, %v370
    %v391 = vld [vmem:[%s2] sm:$0x3]
    %v392 = vld [vmem:[%s3] sm:$0xf]
    %394 = vset.pattern.permute.xlu0 0
    %395 = vperm.xlu0 %394, %v392
    %v396 = vpop.permute.xlu0 %395
    %vm398 = vcmask 588800
    %v400 = vsel %vm398, %v391, 0
    %vm402 = vcmask 1043456
    %v404 = vsel %vm402, %v387, 0
    %v407 = vsel %vm402, %v388, 0
    %v410 = vsel %vm402, %v389, 0
    %v413 = vsel %vm402, %v390, 0
    %415 = vmatprep.subr.bf16.mxu0 %v372
    %416 = vmatpush1.bf16.msra.mxu0 %v371
    %417 = vmatprep.subr.bf16.mxu0 %v376
    %418 = vmatpush1.bf16.msra.mxu0 %v375
    %419 = vmatprep.subr.bf16.mxu0 %v380
    %420 = vmatpush1.bf16.msra.mxu0 %v379
    %421 = vmatprep.subr.bf16.mxu0 %v384
    %422 = vmatpush1.bf16.msra.mxu0 %v383
    %423 = vmatprep.subr.bf16.mxu0 %v407
    %424 = vmatpush1.bf16.msra.mxu0 %v404
    %425 = vmatprep.subr.bf16.mxu0 0
    %426 = vmatpush1.bf16.msra.mxu0 0
    %427 = vmatprep.subr.bf16.mxu0 0
    %428 = vmatpush1.bf16.msra.mxu0 0
    %429 = vmatprep.subr.bf16.mxu0 0
    %430 = vmatpush1.bf16.msra.mxu0 0
    %431 = vmatprep.subr.bf16.mxu0 0
    %432 = vmatpush1.bf16.msra.mxu0 0
    %433 = vmatprep.subr.bf16.mxu0 0
    %434 = vmatpush1.bf16.msra.mxu0 0
    %435 = vmatprep.subr.bf16.mxu0 0
    %436 = vmatpush1.bf16.msra.mxu0 0
    %437 = vmatprep.subr.bf16.mxu0 0
    %438 = vmatpush1.bf16.msra.mxu0 0
    %439 = vmatprep.subr.bf16.mxu0 0
    %440 = vmatpush1.bf16.msra.mxu0 0
    %441 = vmatprep.subr.bf16.mxu0 0
    %442 = vmatpush1.bf16.msra.mxu0 0
    %443 = vmatprep.subr.bf16.mxu0 0
    %444 = vmatpush1.bf16.msra.mxu0 0
    %445 = vmatprep.subr.bf16.mxu0 0
    %446 = vmatpush1.bf16.msra.mxu0 0
    %447 = vmatprep.mubr.bf16.mxu0 0
    %448 = vmatmul.mubr.bf16.gmra.mrb[0].mxu0 %v400
    %v449 = vpop.f32.mrb[0].mxu0
    %v450 = vadd.f32 %v396, %v449
    %v451 = vpop.f32.mrb[0].mxu0
    %v452 = vadd.f32 %v396, %v451
    %v453 = vpop.f32.mrb[0].mxu0
    %v454 = vpop.f32.mrb[0].mxu0
    %455 = vdwg.mxu0
    %456 = vmatprep.subr.bf16.mxu0 %v374
    %457 = vmatpush1.bf16.msra.mxu0 %v373
    %458 = vmatprep.subr.bf16.mxu0 %v378
    %459 = vmatpush1.bf16.msra.mxu0 %v377
    %460 = vmatprep.subr.bf16.mxu0 %v382
    %461 = vmatpush1.bf16.msra.mxu0 %v381
    %462 = vmatprep.subr.bf16.mxu0 %v386
    %463 = vmatpush1.bf16.msra.mxu0 %v385
    %464 = vmatprep.subr.bf16.mxu0 %v413
    %465 = vmatpush1.bf16.msra.mxu0 %v410
    %466 = vmatprep.subr.bf16.mxu0 0
    %467 = vmatpush1.bf16.msra.mxu0 0
    %468 = vmatprep.subr.bf16.mxu0 0
    %469 = vmatpush1.bf16.msra.mxu0 0
    %470 = vmatprep.subr.bf16.mxu0 0
    %471 = vmatpush1.bf16.msra.mxu0 0
    %472 = vmatprep.subr.bf16.mxu0 0
    %473 = vmatpush1.bf16.msra.mxu0 0
    %474 = vmatprep.subr.bf16.mxu0 0
    %475 = vmatpush1.bf16.msra.mxu0 0
    %476 = vmatprep.subr.bf16.mxu0 0
    %477 = vmatpush1.bf16.msra.mxu0 0
    %478 = vmatprep.subr.bf16.mxu0 0
    %479 = vmatpush1.bf16.msra.mxu0 0
    %480 = vmatprep.subr.bf16.mxu0 0
    %481 = vmatpush1.bf16.msra.mxu0 0
    %482 = vmatprep.subr.bf16.mxu0 0
    %483 = vmatpush1.bf16.msra.mxu0 0
    %484 = vmatprep.subr.bf16.mxu0 0
    %485 = vmatpush1.bf16.msra.mxu0 0
    %486 = vmatprep.subr.bf16.mxu0 0
    %487 = vmatpush1.bf16.msra.mxu0 0
    %488 = vmatprep.mubr.bf16.mxu0 0
    %489 = vmatmul.mubr.bf16.gmra.mrb[0].mxu0 %v400
    %v490 = vpop.f32.mrb[0].mxu0
    %v491 = vadd.f32 %v396, %v490
    %v492 = vpop.f32.mrb[0].mxu0
    %v493 = vadd.f32 %v396, %v492
    %v494 = vpop.f32.mrb[0].mxu0
    %v495 = vpop.f32.mrb[0].mxu0
    %496 = vdwg.mxu0
    %vm497 = vcmp.gt.f32.partialorder %v450, 0.0
    %vm498 = vcmp.gt.f32.partialorder %v452, 0.0
    %vm499 = vcmp.gt.f32.partialorder %v491, 0.0
    %vm500 = vcmp.gt.f32.partialorder %v493, 0.0
    %v501 = vmul.f32 %v450, 0.01
    %v502 = vmul.f32 %v452, 0.01
    %v503 = vmul.f32 %v491, 0.01
    %v504 = vmul.f32 %v493, 0.01
    %v505 = vsel %vm497, %v450, %v501
    %v506 = vsel %vm498, %v452, %v502
    %v507 = vsel %vm499, %v491, %v503
    %v508 = vsel %vm500, %v493, %v504
    %510 = vrot.lane.b32.xlu0 %v508, 17
    %v511 = vpop.permute.xlu0 %510
    %516 = vrot.lane.b32.xlu0 %v505, 17
    %v517 = vpop.permute.xlu0 %516
    %518 = vrot.lane.b32.xlu0 %v506, 17
    %v519 = vpop.permute.xlu0 %518
    %520 = vrot.lane.b32.xlu0 %v507, 17
    %v521 = vpop.permute.xlu0 %520
    %v522 = vsel %vm76, %v517, %v519
    %v523 = vsel %vm76, %v519, %v521
    %v524 = vsel %vm76, %v521, %v511
    %v529 = vsel %vm76, %v511, %v517
    %v530 = vmul.f32 %v529, %v88
    %v531 = vmul.f32 %v522, %v92
    %v532 = vmul.f32 %v523, %v96
    %v533 = vmul.f32 %v524, %v100
    %534 = vrot.lane.b32.xlu0 %v508, 16
    %v535 = vpop.permute.xlu0 %534
    %537 = vrot.lane.b32.xlu0 %v505, 16
    %v538 = vpop.permute.xlu0 %537
    %539 = vrot.lane.b32.xlu0 %v506, 16
    %v540 = vpop.permute.xlu0 %539
    %541 = vrot.lane.b32.xlu0 %v507, 16
    %v542 = vpop.permute.xlu0 %541
    %v543 = vsel %vm114, %v538, %v540
    %v544 = vsel %vm114, %v540, %v542
    %v545 = vsel %vm114, %v542, %v535
    %v550 = vsel %vm114, %v535, %v538
    %v551 = vmul.f32 %v550, %v126
    %v552 = vmul.f32 %v543, %v130
    %v553 = vmul.f32 %v544, %v134
    %v554 = vmul.f32 %v545, %v138
    %555 = vrot.lane.b32.xlu0 %v508, 15
    %v556 = vpop.permute.xlu0 %555
    %558 = vrot.lane.b32.xlu0 %v505, 15
    %v559 = vpop.permute.xlu0 %558
    %560 = vrot.lane.b32.xlu0 %v506, 15
    %v561 = vpop.permute.xlu0 %560
    %562 = vrot.lane.b32.xlu0 %v507, 15
    %v563 = vpop.permute.xlu0 %562
    %v564 = vsel %vm152, %v559, %v561
    %v565 = vsel %vm152, %v561, %v563
    %v566 = vsel %vm152, %v563, %v556
    %v571 = vsel %vm152, %v556, %v559
    %v572 = vmul.f32 %v571, %v164
    %v573 = vmul.f32 %v564, %v168
    %v574 = vmul.f32 %v565, %v172
    %v575 = vmul.f32 %v566, %v176
    %576 = vrot.lane.b32.xlu0 %v508, 1
    %v577 = vpop.permute.xlu0 %576
    %579 = vrot.lane.b32.xlu0 %v505, 1
    %v580 = vpop.permute.xlu0 %579
    %581 = vrot.lane.b32.xlu0 %v506, 1
    %v582 = vpop.permute.xlu0 %581
    %583 = vrot.lane.b32.xlu0 %v507, 1
    %v584 = vpop.permute.xlu0 %583
    %v585 = vsel %vm190, %v580, %v582
    %v586 = vsel %vm190, %v582, %v584
    %v587 = vsel %vm190, %v584, %v577
    %v592 = vsel %vm190, %v577, %v580
    %v593 = vmul.f32 %v592, %v202
    %v594 = vmul.f32 %v585, %v206
    %v595 = vmul.f32 %v586, %v210
    %v596 = vmul.f32 %v587, %v214
    %597 = vrot.lane.b32.xlu0 %v505, 127
    %v598 = vpop.permute.xlu0 %597
    %599 = vrot.lane.b32.xlu0 %v506, 127
    %v600 = vpop.permute.xlu0 %599
    %601 = vrot.lane.b32.xlu0 %v507, 127
    %v602 = vpop.permute.xlu0 %601
    %603 = vrot.lane.b32.xlu0 %v508, 127
    %v604 = vpop.permute.xlu0 %603
    %v605 = vsel %vm227, %v598, %v600
    %v606 = vsel %vm227, %v600, %v602
    %v607 = vsel %vm227, %v602, %v604
    %v613 = vsel %vm227, %v604, %v598
    %v614 = vmul.f32 %v605, %v240
    %v615 = vmul.f32 %v606, %v244
    %v616 = vmul.f32 %v607, %v248
    %v617 = vmul.f32 %v613, %v252
    %618 = vrot.lane.b32.xlu0 %v505, 113
    %v619 = vpop.permute.xlu0 %618
    %620 = vrot.lane.b32.xlu0 %v506, 113
    %v621 = vpop.permute.xlu0 %620
    %622 = vrot.lane.b32.xlu0 %v507, 113
    %v623 = vpop.permute.xlu0 %622
    %624 = vrot.lane.b32.xlu0 %v508, 113
    %v625 = vpop.permute.xlu0 %624
    %v626 = vsel %vm265, %v619, %v621
    %v627 = vsel %vm265, %v621, %v623
    %v628 = vsel %vm265, %v623, %v625
    %v634 = vsel %vm265, %v625, %v619
    %v635 = vmul.f32 %v626, %v278
    %v636 = vmul.f32 %v627, %v282
    %v637 = vmul.f32 %v628, %v286
    %v638 = vmul.f32 %v634, %v290
    %639 = vrot.lane.b32.xlu0 %v505, 112
    %v640 = vpop.permute.xlu0 %639
    %641 = vrot.lane.b32.xlu0 %v506, 112
    %v642 = vpop.permute.xlu0 %641
    %643 = vrot.lane.b32.xlu0 %v507, 112
    %v644 = vpop.permute.xlu0 %643
    %645 = vrot.lane.b32.xlu0 %v508, 112
    %v646 = vpop.permute.xlu0 %645
    %v647 = vsel %vm303, %v640, %v642
    %v648 = vsel %vm303, %v642, %v644
    %v649 = vsel %vm303, %v644, %v646
    %v655 = vsel %vm303, %v646, %v640
    %v656 = vmul.f32 %v647, %v316
    %v657 = vmul.f32 %v648, %v320
    %v658 = vmul.f32 %v649, %v324
    %v659 = vmul.f32 %v655, %v328
    %660 = vrot.lane.b32.xlu0 %v505, 111
    %v661 = vpop.permute.xlu0 %660
    %662 = vrot.lane.b32.xlu0 %v506, 111
    %v663 = vpop.permute.xlu0 %662
    %664 = vrot.lane.b32.xlu0 %v507, 111
    %v665 = vpop.permute.xlu0 %664
    %666 = vrot.lane.b32.xlu0 %v508, 111
    %v667 = vpop.permute.xlu0 %666
    %v668 = vsel %vm341, %v661, %v663
    %v669 = vsel %vm341, %v663, %v665
    %v670 = vsel %vm341, %v665, %v667
    %v676 = vsel %vm341, %v667, %v661
    %v677 = vmul.f32 %v668, %v354
    %v678 = vmul.f32 %v669, %v358
    %v679 = vmul.f32 %v670, %v362
    %v680 = vmul.f32 %v676, %v366
    %v685 = vrot.slane %v551, 4
    %v686 = vrot.slane %v552, 4
    %v687 = vrot.slane %v553, 4
    %v688 = vrot.slane %v554, 4
    %v697 = vrot.slane %v593, 4
    %v698 = vrot.slane %v594, 4
    %v699 = vrot.slane %v595, 4
    %v700 = vrot.slane %v596, 4
    %v709 = vrot.slane %v614, 4
    %v710 = vrot.slane %v615, 4
    %v711 = vrot.slane %v616, 4
    %v712 = vrot.slane %v617, 4
    %v721 = vrot.slane %v656, 4
    %v722 = vrot.slane %v657, 4
    %v723 = vrot.slane %v658, 4
    %v724 = vrot.slane %v659, 4
    %v729 = vsel %vm402, %v530, %v685
    %v730 = vsel %vm402, %v531, %v686
    %v731 = vsel %vm402, %v532, %v687
    %v732 = vsel %vm402, %v533, %v688
    %v733 = vsel %vm402, %v572, %v697
    %v734 = vsel %vm402, %v573, %v698
    %v735 = vsel %vm402, %v574, %v699
    %v736 = vsel %vm402, %v575, %v700
    %v737 = vsel %vm402, %v505, %v709
    %v738 = vsel %vm402, %v506, %v710
    %v739 = vsel %vm402, %v507, %v711
    %v740 = vsel %vm402, %v508, %v712
    %v741 = vsel %vm402, %v635, %v721
    %v742 = vsel %vm402, %v636, %v722
    %v743 = vsel %vm402, %v637, %v723
    %v744 = vsel %vm402, %v638, %v724
    %v745 = vpack.c.bf16 %v733, %v729
    %v746 = vpack.c.bf16 %v734, %v730
    %v747 = vpack.c.bf16 %v735, %v731
    %v748 = vpack.c.bf16 %v736, %v732
    %v749 = vpack.c.bf16 %v741, %v737
    %v750 = vpack.c.bf16 %v742, %v738
    %v751 = vpack.c.bf16 %v743, %v739
    %v752 = vpack.c.bf16 %v744, %v740
    %v753 = vpack.c.bf16 %v677, %v677
    %v754 = vpack.c.bf16 %v678, %v678
    %v755 = vpack.c.bf16 %v679, %v679
    %v756 = vpack.c.bf16 %v680, %v680
    %v757 = vld [vmem:[%s4] sm:$0xf]
    %v758 = vld [vmem:[%s5] sm:$0xff]
    %760 = vset.pattern.permute.xlu0 0
    %761 = vperm.xlu0 %760, %v758
    %v762 = vpop.permute.xlu0 %761
    %vm764 = vcmask 293888
    %v766 = vsel %vm764, %v757, 0
    %vm768 = vcmask 1041408
    %v770 = vsel %vm768, %v753, 0
    %v773 = vsel %vm768, %v754, 0
    %v776 = vsel %vm768, %v755, 0
    %v779 = vsel %vm768, %v756, 0
    %781 = vmatprep.subr.bf16.mxu0 %v746
    %782 = vmatpush1.bf16.msra.mxu0 %v745
    %783 = vmatprep.subr.bf16.mxu0 %v750
    %784 = vmatpush1.bf16.msra.mxu0 %v749
    %785 = vmatprep.subr.bf16.mxu0 %v773
    %786 = vmatpush1.bf16.msra.mxu0 %v770
    %787 = vmatprep.subr.bf16.mxu0 0
    %788 = vmatpush1.bf16.msra.mxu0 0
    %789 = vmatprep.subr.bf16.mxu0 0
    %790 = vmatpush1.bf16.msra.mxu0 0
    %791 = vmatprep.subr.bf16.mxu0 0
    %792 = vmatpush1.bf16.msra.mxu0 0
    %793 = vmatprep.subr.bf16.mxu0 0
    %794 = vmatpush1.bf16.msra.mxu0 0
    %795 = vmatprep.subr.bf16.mxu0 0
    %796 = vmatpush1.bf16.msra.mxu0 0
    %797 = vmatprep.subr.bf16.mxu0 0
    %798 = vmatpush1.bf16.msra.mxu0 0
    %799 = vmatprep.subr.bf16.mxu0 0
    %800 = vmatpush1.bf16.msra.mxu0 0
    %801 = vmatprep.subr.bf16.mxu0 0
    %802 = vmatpush1.bf16.msra.mxu0 0
    %803 = vmatprep.subr.bf16.mxu0 0
    %804 = vmatpush1.bf16.msra.mxu0 0
    %805 = vmatprep.subr.bf16.mxu0 0
    %806 = vmatpush1.bf16.msra.mxu0 0
    %807 = vmatprep.subr.bf16.mxu0 0
    %808 = vmatpush1.bf16.msra.mxu0 0
    %809 = vmatprep.subr.bf16.mxu0 0
    %810 = vmatpush1.bf16.msra.mxu0 0
    %811 = vmatprep.subr.bf16.mxu0 0
    %812 = vmatpush1.bf16.msra.mxu0 0
    %813 = vmatprep.mubr.bf16.mxu0 0
    %814 = vmatmul.mubr.bf16.gmra.mrb[0].mxu0 %v766
    %v815 = vpop.f32.mrb[0].mxu0
    %v816 = vadd.f32 %v762, %v815
    %v817 = vpop.f32.mrb[0].mxu0
    %v818 = vadd.f32 %v762, %v817
    %v819 = vpop.f32.mrb[0].mxu0
    %v820 = vpop.f32.mrb[0].mxu0
    %821 = vdwg.mxu0
    %822 = vmatprep.subr.bf16.mxu0 %v748
    %823 = vmatpush1.bf16.msra.mxu0 %v747
    %824 = vmatprep.subr.bf16.mxu0 %v752
    %825 = vmatpush1.bf16.msra.mxu0 %v751
    %826 = vmatprep.subr.bf16.mxu0 %v779
    %827 = vmatpush1.bf16.msra.mxu0 %v776
    %828 = vmatprep.subr.bf16.mxu0 0
    %829 = vmatpush1.bf16.msra.mxu0 0
    %830 = vmatprep.subr.bf16.mxu0 0
    %831 = vmatpush1.bf16.msra.mxu0 0
    %832 = vmatprep.subr.bf16.mxu0 0
    %833 = vmatpush1.bf16.msra.mxu0 0
    %834 = vmatprep.subr.bf16.mxu0 0
    %835 = vmatpush1.bf16.msra.mxu0 0
    %836 = vmatprep.subr.bf16.mxu0 0
    %837 = vmatpush1.bf16.msra.mxu0 0
    %838 = vmatprep.subr.bf16.mxu0 0
    %839 = vmatpush1.bf16.msra.mxu0 0
    %840 = vmatprep.subr.bf16.mxu0 0
    %841 = vmatpush1.bf16.msra.mxu0 0
    %842 = vmatprep.subr.bf16.mxu0 0
    %843 = vmatpush1.bf16.msra.mxu0 0
    %844 = vmatprep.subr.bf16.mxu0 0
    %845 = vmatpush1.bf16.msra.mxu0 0
    %846 = vmatprep.subr.bf16.mxu0 0
    %847 = vmatpush1.bf16.msra.mxu0 0
    %848 = vmatprep.subr.bf16.mxu0 0
    %849 = vmatpush1.bf16.msra.mxu0 0
    %850 = vmatprep.subr.bf16.mxu0 0
    %851 = vmatpush1.bf16.msra.mxu0 0
    %852 = vmatprep.subr.bf16.mxu0 0
    %853 = vmatpush1.bf16.msra.mxu0 0
    %854 = vmatprep.mubr.bf16.mxu0 0
    %855 = vmatmul.mubr.bf16.gmra.mrb[0].mxu0 %v766
    %v856 = vpop.f32.mrb[0].mxu0
    %v857 = vadd.f32 %v762, %v856
    %v858 = vpop.f32.mrb[0].mxu0
    %v859 = vadd.f32 %v762, %v858
    %v860 = vpop.f32.mrb[0].mxu0
    %v861 = vpop.f32.mrb[0].mxu0
    %862 = vdwg.mxu0
    %vm863 = vcmp.gt.f32.partialorder %v816, 0.0
    %vm864 = vcmp.gt.f32.partialorder %v818, 0.0
    %vm865 = vcmp.gt.f32.partialorder %v857, 0.0
    %vm866 = vcmp.gt.f32.partialorder %v859, 0.0
    %v867 = vmul.f32 %v816, 0.01
    %v868 = vmul.f32 %v818, 0.01
    %v869 = vmul.f32 %v857, 0.01
    %v870 = vmul.f32 %v859, 0.01
    %v871 = vsel %vm863, %v816, %v867
    %v872 = vsel %vm864, %v818, %v868
    %v873 = vsel %vm865, %v857, %v869
    %v874 = vsel %vm866, %v859, %v870
    %v875 = vadd.f32 %v871, %v51
    %v876 = vadd.f32 %v872, %v52
    %v877 = vadd.f32 %v873, %v53
    %v878 = vadd.f32 %v874, %v54
    %879 = vst [vmem:[#allocation7] sm:$0xff] %v875
    %880 = vst [vmem:[#allocation7 + $0x8] sm:$0xff] %v876
    %881 = vst [vmem:[#allocation7 + $0x10] sm:$0xff] %v877
    %882 = vst [vmem:[#allocation7 + $0x18] sm:$0xff] %v878
    // Predicated region
    $region34: #{tpu_custom_call.1} parent=1 // pred_check
      _
    $region35: #{tpu_custom_call.1} parent=1 // pred_check_branch
      %884 = sbr.rel (0) target = $region37
    $region36: #{tpu_custom_call.1} parent=1 // pred_region
      %s886 = ssub.s32 512, 512
      %887 = vsyncadd [#allocation4], %s886
      %s889 = sshll.u32 [#allocation7], 4
      %s890 = int_to_ptr.vmem [resolvable:$true] %s889
      %892 = dma.vmem_to_hbm [thread:$0]  %s890, 512, %s6, [#allocation4]
    $region37: #{tpu_custom_call.1} parent=1 // pred_fallthru
      _
    // Predicated region
    $region38: #{tpu_custom_call.1} parent=1 // pred_check
      _
    $region39: #{tpu_custom_call.1} parent=1 // pred_check_branch
      %894 = sbr.rel (0) target = $region41
    $region40: #{tpu_custom_call.1} parent=1 // pred_region
      %895 = dma.done [#allocation4], 512
    $region41: #{tpu_custom_call.1} parent=1 // pred_fallthru
      _
    %896 = vsyncpa [#allocation3], 1
    %897 = vsyncpa [#allocation6], 1
    %898 = vsyncpa [#allocation4], 1

</llo_original>
